<compile_context>
chip_gen: v6e
topology: v6e:2x2x1
jax: 0.10.0
libtpu: 0.0.40
codegen_flags: <defaults>
</compile_context>

<pallas_src>
import jax
import jax.numpy as jnp
from jax.experimental import pallas as pl
from jax.experimental.pallas import tpu as pltpu

_LANES = 128
_DEFAULT_BLOCK_BYTES = 8 * 1024 * 1024   # ~8 MiB per buffer
_MIN_PALLAS_BYTES = 1 * 1024 * 1024      # below this, fused XLA wins


def _scalar_mul_kernel(s_ref, x_ref, o_ref):
    # s_ref: (1,) float32 scalar in SMEM (runtime operand, not a baked constant).
    # Cast to the tensor dtype so the output dtype follows the input.
    o_ref[...] = x_ref[...] * s_ref[0].astype(o_ref.dtype)


def scalar_multiply(x: jax.Array, scalar, *,
                    block_bytes: int = _DEFAULT_BLOCK_BYTES,
                    min_pallas_bytes: int = _MIN_PALLAS_BYTES,
                    donate_input: bool = False) -> jax.Array:
    """Elementwise X * scalar.  Output shape/dtype follow the input.

    NOTE: for integer inputs the scalar is truncated to the integer dtype;
    PyTorch would promote to float instead.
    # TODO(synk): optionally promote integer inputs to float to match torch.
    """
    orig_shape = x.shape
    dtype = x.dtype
    n = x.size

    # Fast path / fallback: tiny tensors (fixed Pallas overhead dominates and
    # XLA can fuse the multiply into neighbours) and non-lane-aligned totals
    # (avoids pad + slice round trips through HBM that would triple traffic).
    if n == 0 or n % _LANES != 0 or x.nbytes < min_pallas_bytes:
        return x * jnp.asarray(scalar, dtype)

    itemsize = jnp.dtype(dtype).itemsize
    sublane = {4: 8, 2: 16, 1: 32}.get(itemsize, 8)
    rows = n // _LANES
    x2d = x.reshape(rows, _LANES)  # free view: n is lane-exact

    # Tile sizing: sublane-aligned, ~block_bytes per buffer.
    max_tile_rows = max(sublane,
                        (block_bytes // (_LANES * itemsize)) // sublane * sublane)
    if rows <= max_tile_rows:
        # Single block; a full-extent dim is exempt from the 8-row tiling rule.
        tile_rows = rows
    else:
        nsteps = pl.cdiv(rows, max_tile_rows)
        if nsteps % 2:
            nsteps += 1  # even, near-equal steps -> balanced across v7x's 2 TCs
        tile_rows = pl.cdiv(pl.cdiv(rows, nsteps), sublane) * sublane
    grid = pl.cdiv(rows, tile_rows)  # ragged trailing block is masked by Pallas

    # Runtime scalar operand in SMEM (works for Python floats and traced values).
    s_arr = jnp.asarray(scalar, jnp.float32).reshape(1)

    out2d = pl.pallas_call(
        _scalar_mul_kernel,
        out_shape=jax.ShapeDtypeStruct((rows, _LANES), dtype),
        grid=(grid,),
        in_specs=[
            pl.BlockSpec(memory_space=pltpu.MemorySpace.SMEM),     # scalar
            pl.BlockSpec((tile_rows, _LANES), lambda i: (i, 0)),   # x tiles
        ],
        out_specs=pl.BlockSpec((tile_rows, _LANES), lambda i: (i, 0)),
        input_output_aliases=({1: 0} if donate_input else {}),
        compiler_params=pltpu.CompilerParams(
            dimension_semantics=("parallel",),
            vmem_limit_bytes=48 * 1024 * 1024,
        ),
    )(s_arr, x2d)

    return out2d.reshape(orig_shape)


if __name__ == "__main__":
    key = jax.random.PRNGKey(0)
    k1, k2, k3 = jax.random.split(key, 3)

    scalar = 2.5  # the module's "parameter"

    # Small NCHW input consistent with the module's usage (2*4*16*16 = 2048 elems).
    x = jax.random.normal(k1, (2, 4, 16, 16), dtype=jnp.float32)
    ref = x * jnp.float32(scalar)

    # Default call: tiny input takes the XLA fast path.
    y_fast = scalar_multiply(x, scalar)
    # Force the Pallas path (single-block grid) to exercise the kernel on TPU.
    y_pallas = scalar_multiply(x, scalar, min_pallas_bytes=0)

    # Multi-step grid + ragged trailing block coverage at a tiny block size:
    # 3*5*128 = 1920 elems -> 15 rows, tile_rows=8, grid=2 (8-row + 7-row ragged).
    x_ragged = jax.random.normal(k2, (3, 5, 128), dtype=jnp.float32)
    y_ragged = scalar_multiply(x_ragged, scalar, min_pallas_bytes=0,
                               block_bytes=8 * _LANES * 4)
    ref_ragged = x_ragged * jnp.float32(scalar)

    # Non-lane-aligned total -> XLA fallback (no pad/slice copies).
    x_odd = jax.random.normal(k3, (5, 7, 13), dtype=jnp.float32)
    y_odd = scalar_multiply(x_odd, scalar)
    ref_odd = x_odd * jnp.float32(scalar)

    jax.block_until_ready((y_fast, y_pallas, y_ragged, y_odd))

    assert y_pallas.shape == x.shape and y_pallas.dtype == x.dtype
    assert jnp.allclose(y_fast, ref, atol=1e-6, rtol=1e-6)
    assert jnp.allclose(y_pallas, ref, atol=1e-6, rtol=1e-6)
    assert jnp.allclose(y_ragged, ref_ragged, atol=1e-6, rtol=1e-6)
    assert jnp.allclose(y_odd, ref_odd, atol=1e-6, rtol=1e-6)

    print("KERNEL_OK")
</pallas_src>

<mosaic_0001>
module attributes {stable_mosaic.version = 11 : i64} {
  func.func @_scalar_mul_kernel(%arg0: i32, %arg1: memref<1xf32, #tpu.memory_space<smem>>, %arg2: memref<16x128xf32, #tpu.memory_space<vmem>>, %arg3: memref<16x128xf32, #tpu.memory_space<vmem>>) attributes {dimension_semantics = [#tpu.dimension_semantics<parallel>], iteration_bounds = array<i64: 1>, scalar_prefetch = 0 : i64, scratch_operands = 0 : i64, tpu.core_type = #tpu.core_type<tc>, window_params = [{transform_indices = @transform_0, window_bounds = array<i64: 1>}, {transform_indices = @transform_1, window_bounds = array<i64: 16, 128>}, {transform_indices = @transform_2, window_bounds = array<i64: 16, 128>}]} {
    %c0 = arith.constant 0 : index
    %c0_0 = arith.constant 0 : index
    %0 = vector.load %arg2[%c0, %c0_0] : memref<16x128xf32, #tpu.memory_space<vmem>>, vector<16x128xf32>
    %c0_1 = arith.constant 0 : index
    %1 = memref.load %arg1[%c0_1] : memref<1xf32, #tpu.memory_space<smem>>
    %2 = vector.broadcast %1 : f32 to vector<16x128xf32>
    %3 = arith.mulf %0, %2 : vector<16x128xf32>
    %c0_2 = arith.constant 0 : index
    %c0_3 = arith.constant 0 : index
    %4 = vector.load %arg3[%c0_2, %c0_3] : memref<16x128xf32, #tpu.memory_space<vmem>>, vector<16x128xf32>
    tpu.vector_store %arg3[%c0_2, %c0_3], %3 {strides = array<i32>} : memref<16x128xf32, #tpu.memory_space<vmem>>, vector<16x128xf32>,
    return
  }
  func.func @transform_0(%arg0: i32) -> i32 {
    %c0_i32 = arith.constant 0 : i32
    %c0_i32_0 = arith.constant 0 : i32
    return %c0_i32 : i32
  }
  func.func @transform_1(%arg0: i32) -> (i32, i32) {
    %c0_i32 = arith.constant 0 : i32
    %c0_i32_0 = arith.constant 0 : i32
    return %arg0, %c0_i32 : i32, i32
  }
  func.func @transform_2(%arg0: i32) -> (i32, i32) {
    %c0_i32 = arith.constant 0 : i32
    %c0_i32_0 = arith.constant 0 : i32
    return %arg0, %c0_i32 : i32, i32
  }
}

</mosaic_0001>

<llo_original>
// kernel: tpu_custom_call.1
$region0: #{tpu_custom_call.1}
  #allocation0 [shape = 'u32[]', space=smem, size = 0x4, offset = 0x4, fixed_abs, tag = 'smem constant byte address 0x4 - core index']
  #allocation1 [shape = 'u32[144,128]{1,0:T(1,128)}', space=vmem, size = 0x12000, scoped, tag = 'internal scratch']
  #allocation2 [shape = 'f32[1]{0:T(128)S(6)}', space=smem, size = 0x200, scoped, tag = 'scoped memory for tpu_custom_call.1']
  %s0 = inlined_call_operand.<no memory space> [shape: f32[1], index: 0, kind: input, shape index: {}]
  %s1 = inlined_call_operand.hbm [shape: f32[16,128], index: 1, kind: input, shape index: {}]
  %s2 = inlined_call_operand.hbm [shape: f32[16,128], index: 2, kind: output, shape index: {}]
  %s3 = sld [smem:[#allocation0]]
  $region22: #{tpu_custom_call.1} parent=0
    _
  %s5 = ssub.s32 1, %s3
  %s6 = scalar_select 0, %s5, %s3
  %7 = sst [smem:[#allocation2]] %s0
  $region1: #{tpu_custom_call.1} parent=0
    #allocation3 [shape = 'u8[8192]{0}', space=vmem, size = 0x2000, scoped, tag = 'input window, operand 1, single buffered']
    #allocation4 [shape = 's32[1]{0}', space=sflag, size = 0x4, scoped, tag = 'scoped memory for tpu_custom_call.1']
    #allocation5 [shape = 's32[1]{0}', space=sflag, size = 0x4, scoped, tag = 'scoped memory for tpu_custom_call.1']
    #allocation6 [shape = 'u8[8192]{0}', space=vmem, size = 0x2000, scoped, tag = 'output window, operand 0, single buffered']
    %8 = vsyncpa [#allocation4], 0
    %9 = vsyncpa [#allocation5], 0
    // Predicated region
    $region2: #{tpu_custom_call.1} parent=1 // pred_check
      _
    $region3: #{tpu_custom_call.1} parent=1 // pred_check_branch
      %11 = sbr.rel (0) target = $region5
    $region4: #{tpu_custom_call.1} parent=1 // pred_region
      _
    $region5: #{tpu_custom_call.1} parent=1 // pred_fallthru
      _
    // Predicated region
    $region6: #{tpu_custom_call.1} parent=1 // pred_check
      _
    $region7: #{tpu_custom_call.1} parent=1 // pred_check_branch
      %13 = sbr.rel (0) target = $region9
    $region8: #{tpu_custom_call.1} parent=1 // pred_region
      %s15 = ssub.s32 256, 256
      %16 = vsyncadd [#allocation4], %s15
      %s17 = sshll.u32 [#allocation3], 4
      %s18 = int_to_ptr.vmem [resolvable:$true] %s17
      %23 = dma.hbm_to_vmem [thread:$0]  %s1, 256, %s18, [#allocation4], 128, 128, 8
    $region9: #{tpu_custom_call.1} parent=1 // pred_fallthru
      _
    // Predicated region
    $region10: #{tpu_custom_call.1} parent=1 // pred_check
      _
    $region11: #{tpu_custom_call.1} parent=1 // pred_check_branch
      %25 = sbr.rel (0) target = $region13
    $region12: #{tpu_custom_call.1} parent=1 // pred_region
      %26 = dma.done [#allocation4], 256
    $region13: #{tpu_custom_call.1} parent=1 // pred_fallthru
      _
    %v27 = vld [vmem:[#allocation3] sm:$0xff]
    %v28 = vld [vmem:[#allocation3 + $0x8] sm:$0xff]
    %s29 = sld [smem:[#allocation2]]
    %v30 = vstv %s29
    %v31 = vmul.f32 %v27, %v30
    %v32 = vmul.f32 %v28, %v30
    %33 = vst [vmem:[#allocation6] sm:$0xff] %v31
    %34 = vst [vmem:[#allocation6 + $0x8] sm:$0xff] %v32
    // Predicated region
    $region14: #{tpu_custom_call.1} parent=1 // pred_check
      _
    $region15: #{tpu_custom_call.1} parent=1 // pred_check_branch
      %36 = sbr.rel (0) target = $region17
    $region16: #{tpu_custom_call.1} parent=1 // pred_region
      %s38 = ssub.s32 256, 256
      %39 = vsyncadd [#allocation5], %s38
      %s40 = sshll.u32 [#allocation6], 4
      %s41 = int_to_ptr.vmem [resolvable:$true] %s40
      %46 = dma.vmem_to_hbm [thread:$0]  %s41, 256, %s2, [#allocation5], 128, 128, 8
    $region17: #{tpu_custom_call.1} parent=1 // pred_fallthru
      _
    // Predicated region
    $region18: #{tpu_custom_call.1} parent=1 // pred_check
      _
    $region19: #{tpu_custom_call.1} parent=1 // pred_check_branch
      %48 = sbr.rel (0) target = $region21
    $region20: #{tpu_custom_call.1} parent=1 // pred_region
      %49 = dma.done [#allocation5], 256
    $region21: #{tpu_custom_call.1} parent=1 // pred_fallthru
      _
    %50 = vsyncpa [#allocation4], 1
    %51 = vsyncpa [#allocation5], 1

</llo_original>
